<compile_context>
chip_gen: v7x
topology: tpu7x:2x2x1
jax: 0.10.0
libtpu: 0.0.40
codegen_flags: <defaults>
</compile_context>

<pallas_src>
import functools

import jax
import jax.numpy as jnp
from jax.experimental import pallas as pl
from jax.experimental.pallas import tpu as pltpu


def _round_up(n: int, m: int) -> int:
    return (n + m - 1) // m * m


def _leaky_relu(x, slope=0.2):
    return jnp.where(x >= 0, x, slope * x)


def _stable_sigmoid(x):
    # sigmoid(x) = 1/(1+exp(-x)), computed with exp(-|x|) so it never overflows.
    p = 1.0 / (1.0 + jnp.exp(-jnp.abs(x)))
    return jnp.where(x >= 0, p, 1.0 - p)


# --------------------------- fused 3-layer MLP kernel ---------------------------
def _mlp_decoder_kernel(x_ref, w1_ref, b1_ref, w2_ref, b2_ref, w3_ref, b3_ref, o_ref):
    # x_ref: (bm, Din)   w1: (Din, H1)   w2: (H1, H2)   w3: (H2, Dout)   biases: (1, *)
    # Cast matmul inputs to the weight storage dtype (no-op for fp32; enables bf16 MXU
    # path when weights are stored in bf16). Accumulation is always fp32.
    x = x_ref[...].astype(w1_ref.dtype)

    h = jnp.dot(x, w1_ref[...], preferred_element_type=jnp.float32) + b1_ref[...]
    h = _leaky_relu(h)

    h = jnp.dot(h.astype(w2_ref.dtype), w2_ref[...],
                preferred_element_type=jnp.float32) + b2_ref[...]
    h = _leaky_relu(h)

    y = jnp.dot(h.astype(w3_ref.dtype), w3_ref[...],
                preferred_element_type=jnp.float32) + b3_ref[...]
    o_ref[...] = _stable_sigmoid(y).astype(o_ref.dtype)


# --------------------------- one-time parameter preparation ---------------------------
def prepare_decoder_params(params, compute_dtype=jnp.float32):
    """Runs ONCE, outside the per-call path: validates layout, casts weights to the
    matmul storage dtype, reshapes biases to (1, out). Biases stay fp32 (added onto
    the fp32 accumulator in-kernel)."""
    prepared = {}
    for name in ("fc1", "fc2", "fc3"):
        w = params[name]["w"]
        b = params[name]["b"]
        assert w.ndim == 2 and b.shape == (w.shape[1],), (
            f"{name}: expected w in (in, out) layout and b of shape (out,); got "
            f"w={w.shape}, b={b.shape}. Transpose PyTorch nn.Linear weights first.")
        prepared[name] = {
            "w": w.astype(compute_dtype),
            "b": b.astype(jnp.float32).reshape(1, -1),
        }
    return prepared


# --------------------------- forward (jitted, per-call path) ---------------------------
@functools.partial(jax.jit, static_argnames=("block_m",))
def simple_decoder_forward(prepared, x, *, block_m: int = 256):
    """Fused Pallas forward for SimpleDecoder.

    prepared: output of prepare_decoder_params().
    x:        (B, latent_dim).
    Returns (B, output_dim) fp32.
    """
    w1, b1 = prepared["fc1"]["w"], prepared["fc1"]["b"]
    w2, b2 = prepared["fc2"]["w"], prepared["fc2"]["b"]
    w3, b3 = prepared["fc3"]["w"], prepared["fc3"]["b"]

    B, Din = x.shape
    H1 = w1.shape[1]
    H2 = w2.shape[1]
    Dout = w3.shape[1]

    # Batch tile: full batch if tiny (block = full dim is always legal); otherwise a
    # multiple of 8 chosen so the grid has >= 2 steps (keeps both v7x TensorCores busy
    # and gives the pipeline something to overlap), capped at block_m.
    if B <= 8:
        bm = B
    else:
        bm = min(block_m, max(8, _round_up(pl.cdiv(B, 2), 8)))
    grid_m = pl.cdiv(B, bm)

    def _const_spec(shape):
        # Constant across the batch grid -> single-buffered (no benefit from
        # double-buffering an invariant operand; halves its VMEM footprint).
        return pl.BlockSpec(shape, lambda i: (0, 0), pipeline_mode=pl.Buffered(1))

    itemsize = jnp.dtype(w1.dtype).itemsize
    cost = pl.CostEstimate(
        flops=2 * B * (Din * H1 + H1 * H2 + H2 * Dout),
        transcendentals=B * Dout,
        bytes_accessed=(
            B * Din * jnp.dtype(x.dtype).itemsize
            + (Din * H1 + H1 * H2 + H2 * Dout) * itemsize
            + (H1 + H2 + Dout) * 4
            + B * Dout * 4
        ),
    )

    out = pl.pallas_call(
        _mlp_decoder_kernel,
        out_shape=jax.ShapeDtypeStruct((B, Dout), jnp.float32),
        grid=(grid_m,),
        in_specs=[
            pl.BlockSpec((bm, Din), lambda i: (i, 0)),   # x: tiled over batch only
            _const_spec((Din, H1)),
            _const_spec((1, H1)),
            _const_spec((H1, H2)),
            _const_spec((1, H2)),
            _const_spec((H2, Dout)),
            _const_spec((1, Dout)),
        ],
        out_specs=pl.BlockSpec((bm, Dout), lambda i: (i, 0)),
        compiler_params=pltpu.CompilerParams(
            # batch tiles are independent -> shard across v7x's two TensorCores
            dimension_semantics=("parallel",),
        ),
        cost_estimate=cost,
    )(x, w1, b1, w2, b2, w3, b3)

    return out


# --------------------------- pure-JAX reference (correctness oracle) ---------------------------
def simple_decoder_reference(params, x):
    h = x @ params["fc1"]["w"] + params["fc1"]["b"]
    h = jnp.where(h >= 0, h, 0.2 * h)
    h = h @ params["fc2"]["w"] + params["fc2"]["b"]
    h = jnp.where(h >= 0, h, 0.2 * h)
    y = h @ params["fc3"]["w"] + params["fc3"]["b"]
    return jax.nn.sigmoid(y)


# --------------------------- deterministic parameter init ---------------------------
def _init_linear(key, din, dout):
    kw, kb = jax.random.split(key)
    bound = 1.0 / (din ** 0.5)  # matches torch.nn.Linear default init scale
    w = jax.random.uniform(kw, (din, dout), jnp.float32, -bound, bound)
    b = jax.random.uniform(kb, (dout,), jnp.float32, -bound, bound)
    return {"w": w, "b": b}


def init_simple_decoder(key, latent_dim, hidden_dim, output_dim):
    k1, k2, k3 = jax.random.split(key, 3)
    return {
        "fc1": _init_linear(k1, latent_dim, hidden_dim),
        "fc2": _init_linear(k2, hidden_dim, hidden_dim),
        "fc3": _init_linear(k3, hidden_dim, output_dim),
    }


if __name__ == "__main__":
    # Small shapes implied by the module: x = (batch, latent_dim).
    batch, latent_dim, hidden_dim, output_dim = 2, 4, 32, 16

    key = jax.random.PRNGKey(0)
    kp, kx = jax.random.split(key)
    params = init_simple_decoder(kp, latent_dim, hidden_dim, output_dim)
    x = jax.random.normal(kx, (batch, latent_dim), jnp.float32)

    # One-time prep (outside the per-call path): layout check, dtype cast, bias reshape.
    prepared = prepare_decoder_params(params, compute_dtype=jnp.float32)

    out = jax.block_until_ready(simple_decoder_forward(prepared, x))

    ref = simple_decoder_reference(params, x)
    assert out.shape == (batch, output_dim)
    assert bool(jnp.all(jnp.isfinite(out)))
    assert bool(jnp.allclose(out, ref, atol=1e-5, rtol=1e-5)), "mismatch vs pure-JAX reference"

    print("KERNEL_OK")
</pallas_src>

<mosaic_0001>
module attributes {stable_mosaic.version = 11 : i64} {
  func.func @_mlp_decoder_kernel(%arg0: i32, %arg1: memref<2x4xf32, #tpu.memory_space<vmem>>, %arg2: memref<4x32xf32, #tpu.memory_space<vmem>>, %arg3: memref<1x32xf32, #tpu.memory_space<vmem>>, %arg4: memref<32x32xf32, #tpu.memory_space<vmem>>, %arg5: memref<1x32xf32, #tpu.memory_space<vmem>>, %arg6: memref<32x16xf32, #tpu.memory_space<vmem>>, %arg7: memref<1x16xf32, #tpu.memory_space<vmem>>, %arg8: memref<2x16xf32, #tpu.memory_space<vmem>>) attributes {dimension_semantics = [#tpu.dimension_semantics<parallel>], iteration_bounds = array<i64: 1>, scalar_prefetch = 0 : i64, scratch_operands = 0 : i64, tpu.core_type = #tpu.core_type<tc>, window_params = [{transform_indices = @transform_0, window_bounds = array<i64: 2, 4>}, {pipeline_mode = #tpu.pipeline_mode<synchronous>, transform_indices = @transform_1, window_bounds = array<i64: 4, 32>}, {pipeline_mode = #tpu.pipeline_mode<synchronous>, transform_indices = @transform_2, window_bounds = array<i64: 1, 32>}, {pipeline_mode = #tpu.pipeline_mode<synchronous>, transform_indices = @transform_3, window_bounds = array<i64: 32, 32>}, {pipeline_mode = #tpu.pipeline_mode<synchronous>, transform_indices = @transform_4, window_bounds = array<i64: 1, 32>}, {pipeline_mode = #tpu.pipeline_mode<synchronous>, transform_indices = @transform_5, window_bounds = array<i64: 32, 16>}, {pipeline_mode = #tpu.pipeline_mode<synchronous>, transform_indices = @transform_6, window_bounds = array<i64: 1, 16>}, {transform_indices = @transform_7, window_bounds = array<i64: 2, 16>}]} {
    %c0 = arith.constant 0 : index
    %c0_0 = arith.constant 0 : index
    %0 = vector.load %arg1[%c0, %c0_0] : memref<2x4xf32, #tpu.memory_space<vmem>>, vector<2x4xf32>
    %c0_1 = arith.constant 0 : index
    %c0_2 = arith.constant 0 : index
    %1 = vector.load %arg2[%c0_1, %c0_2] : memref<4x32xf32, #tpu.memory_space<vmem>>, vector<4x32xf32>
    %cst = arith.constant dense<0.000000e+00> : vector<2x32xf32>
    %2 = tpu.matmul %0, %1, %cst {dimension_numbers = #tpu.dot_dimension_numbers<[1], [0], [0], [1], [0, 0, 1, 1], [], []>} : vector<2x4xf32>, vector<4x32xf32>, vector<2x32xf32> -> vector<2x32xf32>
    %c0_3 = arith.constant 0 : index
    %c0_4 = arith.constant 0 : index
    %3 = vector.load %arg3[%c0_3, %c0_4] : memref<1x32xf32, #tpu.memory_space<vmem>>, vector<1x32xf32>
    %4 = vector.broadcast %3 : vector<1x32xf32> to vector<2x32xf32>
    %5 = arith.addf %2, %4 : vector<2x32xf32>
    %cst_5 = arith.constant 0.000000e+00 : f32
    %6 = vector.broadcast %cst_5 : f32 to vector<2x32xf32>
    %7 = arith.cmpf oge, %5, %6 : vector<2x32xf32>
    %cst_6 = arith.constant 2.000000e-01 : f32
    %8 = vector.broadcast %cst_6 : f32 to vector<2x32xf32>
    %9 = arith.mulf %8, %5 : vector<2x32xf32>
    %10 = arith.select %7, %5, %9 : vector<2x32xi1>, vector<2x32xf32>
    %c0_7 = arith.constant 0 : index
    %c0_8 = arith.constant 0 : index
    %11 = vector.load %arg4[%c0_7, %c0_8] : memref<32x32xf32, #tpu.memory_space<vmem>>, vector<32x32xf32>
    %cst_9 = arith.constant dense<0.000000e+00> : vector<2x32xf32>
    %12 = tpu.matmul %10, %11, %cst_9 {dimension_numbers = #tpu.dot_dimension_numbers<[1], [0], [0], [1], [0, 0, 1, 1], [], []>} : vector<2x32xf32>, vector<32x32xf32>, vector<2x32xf32> -> vector<2x32xf32>
    %c0_10 = arith.constant 0 : index
    %c0_11 = arith.constant 0 : index
    %13 = vector.load %arg5[%c0_10, %c0_11] : memref<1x32xf32, #tpu.memory_space<vmem>>, vector<1x32xf32>
    %14 = vector.broadcast %13 : vector<1x32xf32> to vector<2x32xf32>
    %15 = arith.addf %12, %14 : vector<2x32xf32>
    %cst_12 = arith.constant 0.000000e+00 : f32
    %16 = vector.broadcast %cst_12 : f32 to vector<2x32xf32>
    %17 = arith.cmpf oge, %15, %16 : vector<2x32xf32>
    %cst_13 = arith.constant 2.000000e-01 : f32
    %18 = vector.broadcast %cst_13 : f32 to vector<2x32xf32>
    %19 = arith.mulf %18, %15 : vector<2x32xf32>
    %20 = arith.select %17, %15, %19 : vector<2x32xi1>, vector<2x32xf32>
    %c0_14 = arith.constant 0 : index
    %c0_15 = arith.constant 0 : index
    %21 = vector.load %arg6[%c0_14, %c0_15] : memref<32x16xf32, #tpu.memory_space<vmem>>, vector<32x16xf32>
    %cst_16 = arith.constant dense<0.000000e+00> : vector<2x16xf32>
    %22 = tpu.matmul %20, %21, %cst_16 {dimension_numbers = #tpu.dot_dimension_numbers<[1], [0], [0], [1], [0, 0, 1, 1], [], []>} : vector<2x32xf32>, vector<32x16xf32>, vector<2x16xf32> -> vector<2x16xf32>
    %c0_17 = arith.constant 0 : index
    %c0_18 = arith.constant 0 : index
    %23 = vector.load %arg7[%c0_17, %c0_18] : memref<1x16xf32, #tpu.memory_space<vmem>>, vector<1x16xf32>
    %24 = vector.broadcast %23 : vector<1x16xf32> to vector<2x16xf32>
    %25 = arith.addf %22, %24 : vector<2x16xf32>
    %26 = math.absf %25 : vector<2x16xf32>
    %cst_19 = arith.constant 0.000000e+00 : f32
    %27 = vector.broadcast %cst_19 : f32 to vector<2x16xf32>
    %28 = arith.subf %27, %26 : vector<2x16xf32>
    %29 = math.exp %28 : vector<2x16xf32>
    %cst_20 = arith.constant 1.000000e+00 : f32
    %30 = vector.broadcast %cst_20 : f32 to vector<2x16xf32>
    %31 = arith.addf %30, %29 : vector<2x16xf32>
    %cst_21 = arith.constant 1.000000e+00 : f32
    %32 = vector.broadcast %cst_21 : f32 to vector<2x16xf32>
    %33 = arith.divf %32, %31 : vector<2x16xf32>
    %cst_22 = arith.constant 0.000000e+00 : f32
    %34 = vector.broadcast %cst_22 : f32 to vector<2x16xf32>
    %35 = arith.cmpf oge, %25, %34 : vector<2x16xf32>
    %cst_23 = arith.constant 1.000000e+00 : f32
    %36 = vector.broadcast %cst_23 : f32 to vector<2x16xf32>
    %37 = arith.subf %36, %33 : vector<2x16xf32>
    %38 = arith.select %35, %33, %37 : vector<2x16xi1>, vector<2x16xf32>
    %c0_24 = arith.constant 0 : index
    %c0_25 = arith.constant 0 : index
    %39 = vector.load %arg8[%c0_24, %c0_25] : memref<2x16xf32, #tpu.memory_space<vmem>>, vector<2x16xf32>
    tpu.vector_store %arg8[%c0_24, %c0_25], %38 {strides = array<i32>} : memref<2x16xf32, #tpu.memory_space<vmem>>, vector<2x16xf32>,
    return
  }
  func.func @transform_0(%arg0: i32) -> (i32, i32) {
    %c0_i32 = arith.constant 0 : i32
    %c0_i32_0 = arith.constant 0 : i32
    return %arg0, %c0_i32 : i32, i32
  }
  func.func @transform_1(%arg0: i32) -> (i32, i32) {
    %c0_i32 = arith.constant 0 : i32
    %c0_i32_0 = arith.constant 0 : i32
    %c0_i32_1 = arith.constant 0 : i32
    return %c0_i32, %c0_i32_0 : i32, i32
  }
  func.func @transform_2(%arg0: i32) -> (i32, i32) {
    %c0_i32 = arith.constant 0 : i32
    %c0_i32_0 = arith.constant 0 : i32
    %c0_i32_1 = arith.constant 0 : i32
    return %c0_i32, %c0_i32_0 : i32, i32
  }
  func.func @transform_3(%arg0: i32) -> (i32, i32) {
    %c0_i32 = arith.constant 0 : i32
    %c0_i32_0 = arith.constant 0 : i32
    %c0_i32_1 = arith.constant 0 : i32
    return %c0_i32, %c0_i32_0 : i32, i32
  }
  func.func @transform_4(%arg0: i32) -> (i32, i32) {
    %c0_i32 = arith.constant 0 : i32
    %c0_i32_0 = arith.constant 0 : i32
    %c0_i32_1 = arith.constant 0 : i32
    return %c0_i32, %c0_i32_0 : i32, i32
  }
  func.func @transform_5(%arg0: i32) -> (i32, i32) {
    %c0_i32 = arith.constant 0 : i32
    %c0_i32_0 = arith.constant 0 : i32
    %c0_i32_1 = arith.constant 0 : i32
    return %c0_i32, %c0_i32_0 : i32, i32
  }
  func.func @transform_6(%arg0: i32) -> (i32, i32) {
    %c0_i32 = arith.constant 0 : i32
    %c0_i32_0 = arith.constant 0 : i32
    %c0_i32_1 = arith.constant 0 : i32
    return %c0_i32, %c0_i32_0 : i32, i32
  }
  func.func @transform_7(%arg0: i32) -> (i32, i32) {
    %c0_i32 = arith.constant 0 : i32
    %c0_i32_0 = arith.constant 0 : i32
    return %arg0, %c0_i32 : i32, i32
  }
}

</mosaic_0001>

<llo_original>
// kernel: simple_decoder_forward.1
$region0: #{simple_decoder_forward.1}
  #allocation0 [shape = 'u32[]', space=smem, size = 0x4, offset = 0x4, fixed_abs, tag = 'smem constant byte address 0x4 - core index']
  #allocation1 [shape = 'u32[144,128]{1,0:T(1,128)}', space=vmem, size = 0x12000, scoped, tag = 'internal scratch']
  %s0 = inlined_call_operand.vmem [shape: f32[2,4], index: 0, kind: input, shape index: {}]
  %s1 = inlined_call_operand.vmem [shape: f32[4,32], index: 1, kind: input, shape index: {}]
  %s2 = inlined_call_operand.vmem [shape: f32[1,32], index: 2, kind: input, shape index: {}]
  %s3 = inlined_call_operand.vmem [shape: f32[32,32], index: 3, kind: input, shape index: {}]
  %s4 = inlined_call_operand.vmem [shape: f32[1,32], index: 4, kind: input, shape index: {}]
  %s5 = inlined_call_operand.vmem [shape: f32[32,16], index: 5, kind: input, shape index: {}]
  %s6 = inlined_call_operand.vmem [shape: f32[1,16], index: 6, kind: input, shape index: {}]
  %s7 = inlined_call_operand.hbm [shape: f32[2,16], index: 7, kind: output, shape index: {}]
  %s8 = sld [smem:[#allocation0]]
  $region38: #{simple_decoder_forward.1} parent=0
    _
  %s10 = ssub.s32 1, %s8
  %s11 = scalar_select 0, %s10, %s8
  $region1: #{simple_decoder_forward.1} parent=0
    #allocation2 [shape = 'u8[1024]{0}', space=vmem, size = 0x400, scoped, tag = 'output window, operand 0, single buffered']
    #allocation3 [shape = 's32[1]{0}', space=sflag, size = 0x4, scoped, tag = 'scoped memory for simple_decoder_forward.1']
    %12 = vsyncpa [#allocation3], 0
    // Predicated region
    $region2: #{simple_decoder_forward.1} parent=1 // pred_check
      _
    $region3: #{simple_decoder_forward.1} parent=1 // pred_check_branch
      %14 = sbr.rel (0) target = $region5
    $region4: #{simple_decoder_forward.1} parent=1 // pred_region
      _
    $region5: #{simple_decoder_forward.1} parent=1 // pred_fallthru
      _
    // Predicated region
    $region6: #{simple_decoder_forward.1} parent=1 // pred_check
      _
    $region7: #{simple_decoder_forward.1} parent=1 // pred_check_branch
      %16 = sbr.rel (0) target = $region9
    $region8: #{simple_decoder_forward.1} parent=1 // pred_region
      _
    $region9: #{simple_decoder_forward.1} parent=1 // pred_fallthru
      _
    // Predicated region
    $region10: #{simple_decoder_forward.1} parent=1 // pred_check
      _
    $region11: #{simple_decoder_forward.1} parent=1 // pred_check_branch
      %18 = sbr.rel (0) target = $region13
    $region12: #{simple_decoder_forward.1} parent=1 // pred_region
      _
    $region13: #{simple_decoder_forward.1} parent=1 // pred_fallthru
      _
    // Predicated region
    $region14: #{simple_decoder_forward.1} parent=1 // pred_check
      _
    $region15: #{simple_decoder_forward.1} parent=1 // pred_check_branch
      %20 = sbr.rel (0) target = $region17
    $region16: #{simple_decoder_forward.1} parent=1 // pred_region
      _
    $region17: #{simple_decoder_forward.1} parent=1 // pred_fallthru
      _
    // Predicated region
    $region18: #{simple_decoder_forward.1} parent=1 // pred_check
      _
    $region19: #{simple_decoder_forward.1} parent=1 // pred_check_branch
      %22 = sbr.rel (0) target = $region21
    $region20: #{simple_decoder_forward.1} parent=1 // pred_region
      _
    $region21: #{simple_decoder_forward.1} parent=1 // pred_fallthru
      _
    // Predicated region
    $region22: #{simple_decoder_forward.1} parent=1 // pred_check
      _
    $region23: #{simple_decoder_forward.1} parent=1 // pred_check_branch
      %24 = sbr.rel (0) target = $region25
    $region24: #{simple_decoder_forward.1} parent=1 // pred_region
      _
    $region25: #{simple_decoder_forward.1} parent=1 // pred_fallthru
      _
    // Predicated region
    $region26: #{simple_decoder_forward.1} parent=1 // pred_check
      _
    $region27: #{simple_decoder_forward.1} parent=1 // pred_check_branch
      %26 = sbr.rel (0) target = $region29
    $region28: #{simple_decoder_forward.1} parent=1 // pred_region
      _
    $region29: #{simple_decoder_forward.1} parent=1 // pred_fallthru
      _
    %v27 = vld [vmem:[%s0] sm:$0x3]
    %v28 = vld [vmem:[%s1] sm:$0xf]
    %v29 = vld [vmem:[%s2] sm:$0x1]
    %v31 = vlaneseq
    %v32 = vshrl.u32 %v31, 7
    %v33 = vsub.s32 0, %v32
    %v34 = vrot.slane %v29, %v33
    %vm36 = vcmask 31744
    %v38 = vsel %vm36, %v27, 0
    %vm40 = vcmask 1043456
    %v42 = vsel %vm40, %v28, 0
    %44 = vmatprep.subr.mxu0 0.0
    %45 = vmatpush1.msra.mxu0 %v42
    %46 = vmatprep.subr.mxu0 0.0
    %47 = vmatpush1.msra.mxu0 0.0
    %48 = vmatprep.subr.mxu0 0.0
    %49 = vmatpush1.msra.mxu0 0.0
    %50 = vmatprep.subr.mxu0 0.0
    %51 = vmatpush1.msra.mxu0 0.0
    %52 = vmatprep.subr.mxu0 0.0
    %53 = vmatpush1.msra.mxu0 0.0
    %54 = vmatprep.subr.mxu0 0.0
    %55 = vmatpush1.msra.mxu0 0.0
    %56 = vmatprep.subr.mxu0 0.0
    %57 = vmatpush1.msra.mxu0 0.0
    %58 = vmatprep.subr.mxu0 0.0
    %59 = vmatpush1.msra.mxu0 0.0
    %60 = vmatprep.subr.mxu0 0.0
    %61 = vmatpush1.msra.mxu0 0.0
    %62 = vmatprep.subr.mxu0 0.0
    %63 = vmatpush1.msra.mxu0 0.0
    %64 = vmatprep.subr.mxu0 0.0
    %65 = vmatpush1.msra.mxu0 0.0
    %66 = vmatprep.subr.mxu0 0.0
    %67 = vmatpush1.msra.mxu0 0.0
    %68 = vmatprep.subr.mxu0 0.0
    %69 = vmatpush1.msra.mxu0 0.0
    %70 = vmatprep.subr.mxu0 0.0
    %71 = vmatpush1.msra.mxu0 0.0
    %72 = vmatprep.subr.mxu0 0.0
    %73 = vmatpush1.msra.mxu0 0.0
    %74 = vmatprep.subr.mxu0 0.0
    %75 = vmatpush1.msra.mxu0 0.0
    %76 = vmatprep.subr.mxu0 0.0
    %77 = vmatpush1.msra.mxu0 0.0
    %78 = vmatprep.subr.mxu0 0.0
    %79 = vmatpush1.msra.mxu0 0.0
    %80 = vmatprep.subr.mxu0 0.0
    %81 = vmatpush1.msra.mxu0 0.0
    %82 = vmatprep.subr.mxu0 0.0
    %83 = vmatpush1.msra.mxu0 0.0
    %84 = vmatprep.subr.mxu0 0.0
    %85 = vmatpush1.msra.mxu0 0.0
    %86 = vmatprep.subr.mxu0 0.0
    %87 = vmatpush1.msra.mxu0 0.0
    %88 = vmatprep.subr.mxu0 0.0
    %89 = vmatpush1.msra.mxu0 0.0
    %90 = vmatprep.subr.mxu0 0.0
    %91 = vmatpush1.msra.mxu0 0.0
    %92 = vmatprep.subr.mxu0 0.0
    %93 = vmatpush1.msra.mxu0 0.0
    %94 = vmatprep.subr.mxu0 0.0
    %95 = vmatpush1.msra.mxu0 0.0
    %96 = vmatprep.subr.mxu0 0.0
    %97 = vmatpush1.msra.mxu0 0.0
    %98 = vmatprep.subr.mxu0 0.0
    %99 = vmatpush1.msra.mxu0 0.0
    %100 = vmatprep.subr.mxu0 0.0
    %101 = vmatpush1.msra.mxu0 0.0
    %102 = vmatprep.subr.mxu0 0.0
    %103 = vmatpush1.msra.mxu0 0.0
    %104 = vmatprep.subr.mxu0 0.0
    %105 = vmatpush1.msra.mxu0 0.0
    %106 = vmatprep.subr.mxu0 0.0
    %107 = vmatpush1.msra.mxu0 0.0
    %108 = vmatprep.mubr.f32.mxu0 0.0
    %109 = vmatmul.mubr.f32.gmra.mrb[0].mxu0 %v38
    %v110 = vpop.f32.mrb[0].mxu0
    %v111 = vadd.f32 %v34, %v110
    %v112 = vpop.f32.mrb[0].mxu0
    %113 = vdwg.mxu0
    %vm114 = vcmp.ge.f32.partialorder %v111, 0.0
    %v115 = vmul.f32 %v111, 0.2
    %v116 = vsel %vm114, %v111, %v115
    %v117 = vld [vmem:[%s3] sm:$0xff]
    %v118 = vld [vmem:[%s3 + $0x8] sm:$0xff]
    %v119 = vld [vmem:[%s3 + $0x10] sm:$0xff]
    %v120 = vld [vmem:[%s3 + $0x18] sm:$0xff]
    %v121 = vld [vmem:[%s4] sm:$0x1]
    %v123 = vlaneseq
    %v124 = vshrl.u32 %v123, 7
    %v125 = vsub.s32 0, %v124
    %v126 = vrot.slane %v121, %v125
    %vm128 = vcmask 261120
    %v130 = vsel %vm128, %v116, 0
    %132 = vmatprep.subr.mxu0 0.0
    %133 = vmatpush1.msra.mxu0 %v117
    %134 = vmatprep.subr.mxu0 0.0
    %135 = vmatpush1.msra.mxu0 %v118
    %136 = vmatprep.subr.mxu0 0.0
    %137 = vmatpush1.msra.mxu0 %v119
    %138 = vmatprep.subr.mxu0 0.0
    %139 = vmatpush1.msra.mxu0 %v120
    %140 = vmatprep.subr.mxu0 0.0
    %141 = vmatpush1.msra.mxu0 0.0
    %142 = vmatprep.subr.mxu0 0.0
    %143 = vmatpush1.msra.mxu0 0.0
    %144 = vmatprep.subr.mxu0 0.0
    %145 = vmatpush1.msra.mxu0 0.0
    %146 = vmatprep.subr.mxu0 0.0
    %147 = vmatpush1.msra.mxu0 0.0
    %148 = vmatprep.subr.mxu0 0.0
    %149 = vmatpush1.msra.mxu0 0.0
    %150 = vmatprep.subr.mxu0 0.0
    %151 = vmatpush1.msra.mxu0 0.0
    %152 = vmatprep.subr.mxu0 0.0
    %153 = vmatpush1.msra.mxu0 0.0
    %154 = vmatprep.subr.mxu0 0.0
    %155 = vmatpush1.msra.mxu0 0.0
    %156 = vmatprep.subr.mxu0 0.0
    %157 = vmatpush1.msra.mxu0 0.0
    %158 = vmatprep.subr.mxu0 0.0
    %159 = vmatpush1.msra.mxu0 0.0
    %160 = vmatprep.subr.mxu0 0.0
    %161 = vmatpush1.msra.mxu0 0.0
    %162 = vmatprep.subr.mxu0 0.0
    %163 = vmatpush1.msra.mxu0 0.0
    %164 = vmatprep.subr.mxu0 0.0
    %165 = vmatpush1.msra.mxu0 0.0
    %166 = vmatprep.subr.mxu0 0.0
    %167 = vmatpush1.msra.mxu0 0.0
    %168 = vmatprep.subr.mxu0 0.0
    %169 = vmatpush1.msra.mxu0 0.0
    %170 = vmatprep.subr.mxu0 0.0
    %171 = vmatpush1.msra.mxu0 0.0
    %172 = vmatprep.subr.mxu0 0.0
    %173 = vmatpush1.msra.mxu0 0.0
    %174 = vmatprep.subr.mxu0 0.0
    %175 = vmatpush1.msra.mxu0 0.0
    %176 = vmatprep.subr.mxu0 0.0
    %177 = vmatpush1.msra.mxu0 0.0
    %178 = vmatprep.subr.mxu0 0.0
    %179 = vmatpush1.msra.mxu0 0.0
    %180 = vmatprep.subr.mxu0 0.0
    %181 = vmatpush1.msra.mxu0 0.0
    %182 = vmatprep.subr.mxu0 0.0
    %183 = vmatpush1.msra.mxu0 0.0
    %184 = vmatprep.subr.mxu0 0.0
    %185 = vmatpush1.msra.mxu0 0.0
    %186 = vmatprep.subr.mxu0 0.0
    %187 = vmatpush1.msra.mxu0 0.0
    %188 = vmatprep.subr.mxu0 0.0
    %189 = vmatpush1.msra.mxu0 0.0
    %190 = vmatprep.subr.mxu0 0.0
    %191 = vmatpush1.msra.mxu0 0.0
    %192 = vmatprep.subr.mxu0 0.0
    %193 = vmatpush1.msra.mxu0 0.0
    %194 = vmatprep.subr.mxu0 0.0
    %195 = vmatpush1.msra.mxu0 0.0
    %196 = vmatprep.mubr.f32.mxu0 0.0
    %197 = vmatmul.mubr.f32.gmra.mrb[0].mxu0 %v130
    %v198 = vpop.f32.mrb[0].mxu0
    %v199 = vadd.f32 %v126, %v198
    %v200 = vpop.f32.mrb[0].mxu0
    %201 = vdwg.mxu0
    %vm202 = vcmp.ge.f32.partialorder %v199, 0.0
    %v203 = vmul.f32 %v199, 0.2
    %v204 = vsel %vm202, %v199, %v203
    %v205 = vld [vmem:[%s5] sm:$0xff]
    %v206 = vld [vmem:[%s5 + $0x8] sm:$0xff]
    %v207 = vld [vmem:[%s5 + $0x10] sm:$0xff]
    %v208 = vld [vmem:[%s5 + $0x18] sm:$0xff]
    %v209 = vld [vmem:[%s6] sm:$0x1]
    %v211 = vlaneseq
    %v212 = vshrl.u32 %v211, 7
    %v213 = vsub.s32 0, %v212
    %v214 = vrot.slane %v209, %v213
    %v217 = vsel %vm128, %v204, 0
    %219 = vmatprep.subr.mxu0 0.0
    %220 = vmatpush1.msra.mxu0 %v205
    %221 = vmatprep.subr.mxu0 0.0
    %222 = vmatpush1.msra.mxu0 %v206
    %223 = vmatprep.subr.mxu0 0.0
    %224 = vmatpush1.msra.mxu0 %v207
    %225 = vmatprep.subr.mxu0 0.0
    %226 = vmatpush1.msra.mxu0 %v208
    %227 = vmatprep.subr.mxu0 0.0
    %228 = vmatpush1.msra.mxu0 0.0
    %229 = vmatprep.subr.mxu0 0.0
    %230 = vmatpush1.msra.mxu0 0.0
    %231 = vmatprep.subr.mxu0 0.0
    %232 = vmatpush1.msra.mxu0 0.0
    %233 = vmatprep.subr.mxu0 0.0
    %234 = vmatpush1.msra.mxu0 0.0
    %235 = vmatprep.subr.mxu0 0.0
    %236 = vmatpush1.msra.mxu0 0.0
    %237 = vmatprep.subr.mxu0 0.0
    %238 = vmatpush1.msra.mxu0 0.0
    %239 = vmatprep.subr.mxu0 0.0
    %240 = vmatpush1.msra.mxu0 0.0
    %241 = vmatprep.subr.mxu0 0.0
    %242 = vmatpush1.msra.mxu0 0.0
    %243 = vmatprep.subr.mxu0 0.0
    %244 = vmatpush1.msra.mxu0 0.0
    %245 = vmatprep.subr.mxu0 0.0
    %246 = vmatpush1.msra.mxu0 0.0
    %247 = vmatprep.subr.mxu0 0.0
    %248 = vmatpush1.msra.mxu0 0.0
    %249 = vmatprep.subr.mxu0 0.0
    %250 = vmatpush1.msra.mxu0 0.0
    %251 = vmatprep.subr.mxu0 0.0
    %252 = vmatpush1.msra.mxu0 0.0
    %253 = vmatprep.subr.mxu0 0.0
    %254 = vmatpush1.msra.mxu0 0.0
    %255 = vmatprep.subr.mxu0 0.0
    %256 = vmatpush1.msra.mxu0 0.0
    %257 = vmatprep.subr.mxu0 0.0
    %258 = vmatpush1.msra.mxu0 0.0
    %259 = vmatprep.subr.mxu0 0.0
    %260 = vmatpush1.msra.mxu0 0.0
    %261 = vmatprep.subr.mxu0 0.0
    %262 = vmatpush1.msra.mxu0 0.0
    %263 = vmatprep.subr.mxu0 0.0
    %264 = vmatpush1.msra.mxu0 0.0
    %265 = vmatprep.subr.mxu0 0.0
    %266 = vmatpush1.msra.mxu0 0.0
    %267 = vmatprep.subr.mxu0 0.0
    %268 = vmatpush1.msra.mxu0 0.0
    %269 = vmatprep.subr.mxu0 0.0
    %270 = vmatpush1.msra.mxu0 0.0
    %271 = vmatprep.subr.mxu0 0.0
    %272 = vmatpush1.msra.mxu0 0.0
    %273 = vmatprep.subr.mxu0 0.0
    %274 = vmatpush1.msra.mxu0 0.0
    %275 = vmatprep.subr.mxu0 0.0
    %276 = vmatpush1.msra.mxu0 0.0
    %277 = vmatprep.subr.mxu0 0.0
    %278 = vmatpush1.msra.mxu0 0.0
    %279 = vmatprep.subr.mxu0 0.0
    %280 = vmatpush1.msra.mxu0 0.0
    %281 = vmatprep.subr.mxu0 0.0
    %282 = vmatpush1.msra.mxu0 0.0
    %283 = vmatprep.mubr.f32.mxu0 0.0
    %284 = vmatmul.mubr.f32.gmra.mrb[0].mxu0 %v217
    %v285 = vpop.f32.mrb[0].mxu0
    %v286 = vadd.f32 %v214, %v285
    %v287 = vpop.f32.mrb[0].mxu0
    %288 = vdwg.mxu0
    %v289 = vand.u32 2147483647, %v286
    %v290 = vsub.f32 0.0, %v289
    %v291 = vmul.f32 %v290, 1.442695
    %v292 = vpow.pop %v291
    %v293 = vadd.f32 %v292, 1.0
    %v294 = vrcp.pop %v293
    %v295 = vmul.f32 1.0, %v294
    %vm296 = vcmp.ge.f32.partialorder %v286, 0.0
    %v297 = vsub.f32 1.0, %v295
    %v298 = vsel %vm296, %v295, %v297
    %vm299 = vcmask 123904
    %300 = vst.msk [vmem:[#allocation2] sm:$0x3] %vm299, %v298
    // Predicated region
    $region30: #{simple_decoder_forward.1} parent=1 // pred_check
      _
    $region31: #{simple_decoder_forward.1} parent=1 // pred_check_branch
      %302 = sbr.rel (0) target = $region33
    $region32: #{simple_decoder_forward.1} parent=1 // pred_region
      %s304 = ssub.s32 32, 32
      %305 = vsyncadd [#allocation3], %s304
      %s307 = sshll.u32 [#allocation2], 4
      %s308 = int_to_ptr.vmem [resolvable:$true] %s307
      %310 = dma.vmem_to_hbm [thread:$0]  %s308, 32, %s7, [#allocation3]
    $region33: #{simple_decoder_forward.1} parent=1 // pred_fallthru
      _
    // Predicated region
    $region34: #{simple_decoder_forward.1} parent=1 // pred_check
      _
    $region35: #{simple_decoder_forward.1} parent=1 // pred_check_branch
      %312 = sbr.rel (0) target = $region37
    $region36: #{simple_decoder_forward.1} parent=1 // pred_region
      %313 = dma.done [#allocation3], 32
    $region37: #{simple_decoder_forward.1} parent=1 // pred_fallthru
      _
    %314 = vsyncpa [#allocation3], 1

</llo_original>
